<compile_context>
chip_gen: v6e
topology: v6e:2x2x1
jax: 0.10.0
libtpu: 0.0.40
codegen_flags: <defaults>
</compile_context>

<pallas_src>
import functools

import jax
import jax.numpy as jnp
from jax import lax
from jax.experimental import pallas as pl
from jax.experimental.pallas import tpu as pltpu


def _round_up(x, m):
    return (x + m - 1) // m * m


def _pick_tile(dim, candidates):
    for c in candidates:
        if c <= dim and dim % c == 0:
            return c
    return dim


@functools.lru_cache(maxsize=None)
def _vmem_budget_bytes():
    """Usable VMEM budget gated on the actual chip (v7x: 64 MiB/TC, v5e/v6e: 128 MiB)."""
    cap = 64 * 1024 * 1024  # conservative default: assume v7x-sized VMEM
    try:
        info = pltpu.get_tpu_info()
        cap = int(getattr(info, "vmem_capacity_bytes", cap))
    except Exception:
        pass
    return max(32 * 1024 * 1024, min(cap * 3 // 4, 96 * 1024 * 1024))


def _choose_tc(T, max_tc=64):
    """Pick a time-chunk size; prefer an exact divisor, else pad T up."""
    for c in (max_tc, 48, 32, 24, 16, 8):
        if c <= T and T % c == 0:
            return c, T
    tc = min(max_tc, _round_up(T, 8))
    return tc, _round_up(T, tc)


# ----------------------------------------------------------------------------
# Weight-stationary tiled GEMM + bias kernel: (M, K) @ (K, N) + b   (decoder)
# ----------------------------------------------------------------------------
def _matmul_bias_kernel(x_ref, w_ref, b_ref, o_ref):
    acc = jnp.dot(x_ref[...].astype(w_ref.dtype), w_ref[...],
                  preferred_element_type=jnp.float32)
    o_ref[...] = (acc + b_ref[...]).astype(o_ref.dtype)


def matmul_bias(x, w, b, *, out_dtype=jnp.float32):
    """x:(M,K) @ w:(K,N) + b:(1,N). K, N must be 128-multiples (pre-padded).

    Grid is (N//tn, M//tm) with the M axis innermost, so the (K, tn) weight block
    stays resident across all M tiles (no per-M-tile weight re-streaming)."""
    M, K = x.shape
    Kw, N = w.shape
    assert K == Kw and K % 128 == 0 and N % 128 == 0
    budget = _vmem_budget_bytes()
    tm_d, tn_d = (512, 1024) if budget >= 64 * 1024 * 1024 else (256, 512)
    tn = _pick_tile(N, (tn_d, 1024, 512, 384, 256, 128))
    tm = min(tm_d, _round_up(M, 16))
    Mp = _round_up(M, tm)
    if Mp != M:
        x = jnp.pad(x, ((0, Mp - M), (0, 0)))
    out = pl.pallas_call(
        _matmul_bias_kernel,
        out_shape=jax.ShapeDtypeStruct((Mp, N), out_dtype),
        grid_spec=pltpu.PrefetchScalarGridSpec(
            num_scalar_prefetch=0,
            grid=(N // tn, Mp // tm),                          # M innermost
            in_specs=[
                pl.BlockSpec((tm, K), lambda j, i: (i, 0)),    # activations (streamed)
                pl.BlockSpec((K, tn), lambda j, i: (0, j)),    # weight (stationary per j)
                pl.BlockSpec((1, tn), lambda j, i: (0, j)),    # bias
            ],
            out_specs=pl.BlockSpec((tm, tn), lambda j, i: (i, j)),
        ),
        compiler_params=pltpu.CompilerParams(
            dimension_semantics=("parallel", "parallel"),
            vmem_limit_bytes=budget),
    )(x, w, b)
    return out[:M] if Mp != M else out


# ----------------------------------------------------------------------------
# Fused recurrence kernel: per time-chunk, (1) one big input-projection GEMM for
# the whole chunk, then (2) the serial tanh recurrence with h carried in VMEM.
# ----------------------------------------------------------------------------
def _rnn_fused_kernel(x_ref, wih_ref, b_ref, whh_ref, h0_ref, out_ref,
                      h_scr, xp_scr, *, unroll):
    c = pl.program_id(0)

    @pl.when(c == 0)
    def _():
        h_scr[...] = h0_ref[...]

    tc, Bp, Din = x_ref.shape
    Hp = out_ref.shape[-1]

    # Chunk input projection: one (tc*Bp, Din) @ (Din, Hp) MXU GEMM + folded bias.
    # Independent of the previous chunk's recurrence -> pipelines against it.
    x2d = x_ref[...].reshape(tc * Bp, Din)
    xp = jnp.dot(x2d, wih_ref[...], preferred_element_type=jnp.float32) + b_ref[...]
    xp_scr[...] = xp.reshape(tc, Bp, Hp)

    whh = whh_ref[...]  # hoisted: single VMEM load of W_hh^T for the whole chunk

    def step(t, carry):
        h_prev = h_scr[...]
        h = jnp.tanh(xp_scr[t]
                     + jnp.dot(h_prev.astype(whh.dtype), whh,
                               preferred_element_type=jnp.float32))
        h_scr[...] = h
        out_ref[t] = h.astype(out_ref.dtype)
        return carry

    lax.fori_loop(0, tc, step, 0, unroll=unroll)


def rnn_layer_fused(x, w_ih_t, b, w_hh_t, h0, *, tc):
    """x: (Tp, Bp, Din) bf16; returns (Tp, Bp, Hp) bf16 per-step hidden states.

    Padded batch rows carry garbage through the recurrence; rows are independent
    and sliced off by the caller, so outputs for real rows are unaffected."""
    Tp, Bp, Din = x.shape
    Hp = w_hh_t.shape[-1]
    unroll = tc if tc <= 16 else 8
    return pl.pallas_call(
        functools.partial(_rnn_fused_kernel, unroll=unroll),
        out_shape=jax.ShapeDtypeStruct((Tp, Bp, Hp), jnp.bfloat16),
        grid_spec=pltpu.PrefetchScalarGridSpec(
            num_scalar_prefetch=0,
            grid=(Tp // tc,),
            in_specs=[
                pl.BlockSpec((tc, Bp, Din), lambda c: (c, 0, 0)),  # input chunk
                pl.BlockSpec((Din, Hp), lambda c: (0, 0)),         # W_ih^T (resident)
                pl.BlockSpec((1, Hp), lambda c: (0, 0)),           # folded bias (resident)
                pl.BlockSpec((Hp, Hp), lambda c: (0, 0)),          # W_hh^T (resident)
                pl.BlockSpec((Bp, Hp), lambda c: (0, 0)),          # h0 (resident)
            ],
            out_specs=pl.BlockSpec((tc, Bp, Hp), lambda c: (c, 0, 0)),
            scratch_shapes=[pltpu.VMEM((Bp, Hp), jnp.float32),      # carried hidden state
                            pltpu.VMEM((tc, Bp, Hp), jnp.float32)], # chunk xproj (f32)
        ),
        compiler_params=pltpu.CompilerParams(
            dimension_semantics=("arbitrary",),                     # sequential recurrence
            vmem_limit_bytes=_vmem_budget_bytes()),
    )(x, w_ih_t, b, w_hh_t, h0)


# ----------------------------------------------------------------------------
# Parameter construction (PyTorch init semantics), padded to lane-dense shapes.
# ----------------------------------------------------------------------------
def init_params(key, vocab, embd_dim, hidden, num_layers, init_range=0.1,
                weight_dtype=jnp.bfloat16):
    Dp = _round_up(embd_dim, 128)
    Hp = _round_up(hidden, 128)
    Vp = _round_up(vocab, 128)
    keys = jax.random.split(key, 2 + 4 * num_layers)
    params = {"dims": (vocab, embd_dim, hidden, num_layers, Dp, Hp, Vp)}

    # encoder.weight.uniform_(-0.1, 0.1); padded embedding columns are zero.
    emb = jax.random.uniform(keys[0], (vocab, embd_dim), jnp.float32,
                             -init_range, init_range)
    params["emb"] = jnp.pad(emb, ((0, 0), (0, Dp - embd_dim))).astype(weight_dtype)

    # decoder: weight uniform(-0.1, 0.1), bias 0  (store padded W^T for the kernel).
    dec_w = jax.random.uniform(keys[1], (vocab, hidden), jnp.float32,
                               -init_range, init_range)
    params["dec_w_t"] = jnp.pad(
        dec_w.T, ((0, Hp - hidden), (0, Vp - vocab))).astype(weight_dtype)
    params["dec_b"] = jnp.zeros((1, Vp), jnp.float32)

    # nn.RNN default init: U(-1/sqrt(H), 1/sqrt(H)); biases folded together and
    # folded into the fused input projection.
    k = 1.0 / float(hidden) ** 0.5
    w_ih_t, w_hh_t, b_comb = [], [], []
    for l in range(num_layers):
        din = embd_dim if l == 0 else hidden
        din_p = Dp if l == 0 else Hp
        kw = keys[2 + 4 * l: 6 + 4 * l]
        w_ih = jax.random.uniform(kw[0], (hidden, din), jnp.float32, -k, k)
        w_hh = jax.random.uniform(kw[1], (hidden, hidden), jnp.float32, -k, k)
        b_ih = jax.random.uniform(kw[2], (hidden,), jnp.float32, -k, k)
        b_hh = jax.random.uniform(kw[3], (hidden,), jnp.float32, -k, k)
        w_ih_t.append(jnp.pad(w_ih.T, ((0, din_p - din),
                                       (0, Hp - hidden))).astype(weight_dtype))
        w_hh_t.append(jnp.pad(w_hh.T, ((0, Hp - hidden),
                                       (0, Hp - hidden))).astype(weight_dtype))
        b_comb.append(jnp.pad((b_ih + b_hh).reshape(1, hidden),
                              ((0, 0), (0, Hp - hidden))))
    params["w_ih_t"] = w_ih_t
    params["w_hh_t"] = w_hh_t
    params["b"] = b_comb
    return params


# ----------------------------------------------------------------------------
# Full forward: Embedding -> (dropout=identity) -> multi-layer RNN -> Linear
# ----------------------------------------------------------------------------
def rnn_parent_forward(params, input_ids, hidden):
    vocab, embd_dim, H, num_layers, Dp, Hp, Vp = params["dims"]
    T, B = input_ids.shape
    Bp = _round_up(B, 16)          # 16: bf16 sublane-dense stores
    tc, Tp = _choose_tc(T)

    # Pad ids (cheap int pad) BEFORE the embedding gather; padded rows are token 0
    # and are sliced off at the end (rows are independent).
    ids = jnp.pad(input_ids, ((0, 0), (0, Bp - B)))
    x = jnp.take(params["emb"], ids, axis=0)                  # (T, Bp, Dp) bf16
    if Tp != T:
        x = jnp.pad(x, ((0, Tp - T), (0, 0), (0, 0)))         # padded time steps unused

    # pad initial hidden state to lane-dense (num_layers, Bp, Hp)
    h0 = jnp.pad(hidden.astype(jnp.float32), ((0, 0), (0, Bp - B), (0, Hp - H)))

    # dropout on emb: identity (eval mode)
    h_finals = []
    for l in range(num_layers):
        x = rnn_layer_fused(x, params["w_ih_t"][l], params["b"][l],
                            params["w_hh_t"][l], h0[l], tc=tc)     # (Tp, Bp, Hp) bf16
        # final hidden of layer l == its output at the last real time step
        h_finals.append(x[T - 1, :B, :H].astype(jnp.float32))

    # dropout on output: identity (eval); decoder over all real timesteps, one GEMM
    dec_in = x[:T].reshape(T * Bp, Hp)
    decoded = matmul_bias(dec_in, params["dec_w_t"], params["dec_b"],
                          out_dtype=jnp.float32)
    decoded = decoded.reshape(T, Bp, Vp)[:, :B, :vocab]
    return decoded, jnp.stack(h_finals, axis=0)


if __name__ == "__main__":
    # small shapes consistent with the module
    VOCAB, EMBD, HIDDEN, LAYERS = 64, 32, 32, 2
    T, B = 8, 2

    key = jax.random.PRNGKey(0)
    k_params, k_ids = jax.random.split(key)
    params = init_params(k_params, VOCAB, EMBD, HIDDEN, LAYERS)

    input_ids = jax.random.randint(k_ids, (T, B), 0, VOCAB, dtype=jnp.int32)
    hidden0 = jnp.zeros((LAYERS, B, HIDDEN), jnp.float32)     # init_hidden equivalent

    out, h_n = rnn_parent_forward(params, input_ids, hidden0)
    out = jax.block_until_ready(out)
    h_n = jax.block_until_ready(h_n)

    assert out.shape == (T, B, VOCAB), out.shape
    assert h_n.shape == (LAYERS, B, HIDDEN), h_n.shape
    assert bool(jnp.all(jnp.isfinite(out))) and bool(jnp.all(jnp.isfinite(h_n)))
    print("KERNEL_OK")
</pallas_src>

<mosaic_0001>
module attributes {stable_mosaic.version = 11 : i64} {
  func.func @_rnn_fused_kernel(%arg0: i32, %arg1: memref<8x16x128xbf16, #tpu.memory_space<vmem>>, %arg2: memref<128x128xbf16, #tpu.memory_space<vmem>>, %arg3: memref<1x128xf32, #tpu.memory_space<vmem>>, %arg4: memref<128x128xbf16, #tpu.memory_space<vmem>>, %arg5: memref<16x128xf32, #tpu.memory_space<vmem>>, %arg6: memref<8x16x128xbf16, #tpu.memory_space<vmem>>, %arg7: memref<16x128xf32, #tpu.memory_space<vmem>>, %arg8: memref<8x16x128xf32, #tpu.memory_space<vmem>>) attributes {dimension_semantics = [#tpu.dimension_semantics<arbitrary>], iteration_bounds = array<i64: 1>, scalar_prefetch = 0 : i64, scratch_operands = 2 : i64, tpu.core_type = #tpu.core_type<tc>, window_params = [{transform_indices = @transform_0, window_bounds = array<i64: 8, 16, 128>}, {pipeline_mode = #tpu.pipeline_mode<synchronous>, transform_indices = @transform_1, window_bounds = array<i64: 128, 128>}, {pipeline_mode = #tpu.pipeline_mode<synchronous>, transform_indices = @transform_2, window_bounds = array<i64: 1, 128>}, {pipeline_mode = #tpu.pipeline_mode<synchronous>, transform_indices = @transform_3, window_bounds = array<i64: 128, 128>}, {pipeline_mode = #tpu.pipeline_mode<synchronous>, transform_indices = @transform_4, window_bounds = array<i64: 16, 128>}, {transform_indices = @transform_5, window_bounds = array<i64: 8, 16, 128>}]} {
    %c0_i32 = arith.constant 0 : i32
    %0 = arith.cmpi eq, %arg0, %c0_i32 : i32
    %1 = arith.extui %0 : i1 to i32
    %c0_i32_0 = arith.constant 0 : i32
    %2 = arith.cmpi ne, %1, %c0_i32_0 : i32
    scf.if %2 {
      %c0_85 = arith.constant 0 : index
      %c0_86 = arith.constant 0 : index
      %125 = vector.load %arg5[%c0_85, %c0_86] : memref<16x128xf32, #tpu.memory_space<vmem>>, vector<16x128xf32>
      %c0_87 = arith.constant 0 : index
      %c0_88 = arith.constant 0 : index
      %126 = vector.load %arg7[%c0_87, %c0_88] : memref<16x128xf32, #tpu.memory_space<vmem>>, vector<16x128xf32>
      tpu.vector_store %arg7[%c0_87, %c0_88], %125 {strides = array<i32>} : memref<16x128xf32, #tpu.memory_space<vmem>>, vector<16x128xf32>,
    } else {
    }
    %c0 = arith.constant 0 : index
    %c0_1 = arith.constant 0 : index
    %c0_2 = arith.constant 0 : index
    %3 = vector.load %arg1[%c0, %c0_1, %c0_2] : memref<8x16x128xbf16, #tpu.memory_space<vmem>>, vector<8x16x128xbf16>
    %4 = vector.shape_cast %3 : vector<8x16x128xbf16> to vector<128x128xbf16>
    %c0_3 = arith.constant 0 : index
    %c0_4 = arith.constant 0 : index
    %5 = vector.load %arg2[%c0_3, %c0_4] : memref<128x128xbf16, #tpu.memory_space<vmem>>, vector<128x128xbf16>
    %cst = arith.constant dense<0.000000e+00> : vector<128x128xf32>
    %6 = tpu.matmul %4, %5, %cst {dimension_numbers = #tpu.dot_dimension_numbers<[1], [0], [0], [1], [0, 0, 1, 1], [], []>} : vector<128x128xbf16>, vector<128x128xbf16>, vector<128x128xf32> -> vector<128x128xf32>
    %c0_5 = arith.constant 0 : index
    %c0_6 = arith.constant 0 : index
    %7 = vector.load %arg3[%c0_5, %c0_6] : memref<1x128xf32, #tpu.memory_space<vmem>>, vector<1x128xf32>
    %8 = vector.broadcast %7 : vector<1x128xf32> to vector<128x128xf32>
    %9 = arith.addf %6, %8 : vector<128x128xf32>
    %10 = vector.shape_cast %9 : vector<128x128xf32> to vector<8x16x128xf32>
    %c0_7 = arith.constant 0 : index
    %c0_8 = arith.constant 0 : index
    %c0_9 = arith.constant 0 : index
    %11 = vector.load %arg8[%c0_7, %c0_8, %c0_9] : memref<8x16x128xf32, #tpu.memory_space<vmem>>, vector<8x16x128xf32>
    tpu.vector_store %arg8[%c0_7, %c0_8, %c0_9], %10 {strides = array<i32>} : memref<8x16x128xf32, #tpu.memory_space<vmem>>, vector<8x16x128xf32>,
    %c0_10 = arith.constant 0 : index
    %c0_11 = arith.constant 0 : index
    %12 = vector.load %arg4[%c0_10, %c0_11] : memref<128x128xbf16, #tpu.memory_space<vmem>>, vector<128x128xbf16>
    %c0_i32_12 = arith.constant 0 : i32
    %c0_13 = arith.constant 0 : index
    %c0_14 = arith.constant 0 : index
    %13 = vector.load %arg7[%c0_13, %c0_14] : memref<16x128xf32, #tpu.memory_space<vmem>>, vector<16x128xf32>
    %14 = arith.index_cast %c0_i32_12 : i32 to index
    %c0_15 = arith.constant 0 : index
    %c0_16 = arith.constant 0 : index
    %15 = vector.load %arg8[%14, %c0_15, %c0_16] : memref<8x16x128xf32, #tpu.memory_space<vmem>>, vector<1x16x128xf32>
    %16 = vector.shape_cast %15 : vector<1x16x128xf32> to vector<16x128xf32>
    %17 = arith.truncf %13 : vector<16x128xf32> to vector<16x128xbf16>
    %cst_17 = arith.constant dense<0.000000e+00> : vector<16x128xf32>
    %18 = tpu.matmul %17, %12, %cst_17 {dimension_numbers = #tpu.dot_dimension_numbers<[1], [0], [0], [1], [0, 0, 1, 1], [], []>} : vector<16x128xbf16>, vector<128x128xbf16>, vector<16x128xf32> -> vector<16x128xf32>
    %19 = arith.addf %16, %18 : vector<16x128xf32>
    %20 = math.tanh %19 : vector<16x128xf32>
    %c0_18 = arith.constant 0 : index
    %c0_19 = arith.constant 0 : index
    %21 = vector.load %arg7[%c0_18, %c0_19] : memref<16x128xf32, #tpu.memory_space<vmem>>, vector<16x128xf32>
    tpu.vector_store %arg7[%c0_18, %c0_19], %20 {strides = array<i32>} : memref<16x128xf32, #tpu.memory_space<vmem>>, vector<16x128xf32>,
    %22 = arith.truncf %20 : vector<16x128xf32> to vector<16x128xbf16>
    %23 = arith.index_cast %c0_i32_12 : i32 to index
    %c0_20 = arith.constant 0 : index
    %c0_21 = arith.constant 0 : index
    %24 = vector.load %arg6[%23, %c0_20, %c0_21] : memref<8x16x128xbf16, #tpu.memory_space<vmem>>, vector<1x16x128xbf16>
    %25 = vector.shape_cast %24 : vector<1x16x128xbf16> to vector<16x128xbf16>
    %26 = vector.shape_cast %22 : vector<16x128xbf16> to vector<1x16x128xbf16>
    tpu.vector_store %arg6[%23, %c0_20, %c0_21], %26 {strides = array<i32>} : memref<8x16x128xbf16, #tpu.memory_space<vmem>>, vector<1x16x128xbf16>,
    %c1_i32 = arith.constant 1 : i32
    %c0_22 = arith.constant 0 : index
    %c0_23 = arith.constant 0 : index
    %27 = vector.load %arg7[%c0_22, %c0_23] : memref<16x128xf32, #tpu.memory_space<vmem>>, vector<16x128xf32>
    %28 = arith.index_cast %c1_i32 : i32 to index
    %c0_24 = arith.constant 0 : index
    %c0_25 = arith.constant 0 : index
    %29 = vector.load %arg8[%28, %c0_24, %c0_25] : memref<8x16x128xf32, #tpu.memory_space<vmem>>, vector<1x16x128xf32>
    %30 = vector.shape_cast %29 : vector<1x16x128xf32> to vector<16x128xf32>
    %31 = arith.truncf %27 : vector<16x128xf32> to vector<16x128xbf16>
    %cst_26 = arith.constant dense<0.000000e+00> : vector<16x128xf32>
    %32 = tpu.matmul %31, %12, %cst_26 {dimension_numbers = #tpu.dot_dimension_numbers<[1], [0], [0], [1], [0, 0, 1, 1], [], []>} : vector<16x128xbf16>, vector<128x128xbf16>, vector<16x128xf32> -> vector<16x128xf32>
    %33 = arith.addf %30, %32 : vector<16x128xf32>
    %34 = math.tanh %33 : vector<16x128xf32>
    %c0_27 = arith.constant 0 : index
    %c0_28 = arith.constant 0 : index
    %35 = vector.load %arg7[%c0_27, %c0_28] : memref<16x128xf32, #tpu.memory_space<vmem>>, vector<16x128xf32>
    tpu.vector_store %arg7[%c0_27, %c0_28], %34 {strides = array<i32>} : memref<16x128xf32, #tpu.memory_space<vmem>>, vector<16x128xf32>,
    %36 = arith.truncf %34 : vector<16x128xf32> to vector<16x128xbf16>
    %37 = arith.index_cast %c1_i32 : i32 to index
    %c0_29 = arith.constant 0 : index
    %c0_30 = arith.constant 0 : index
    %38 = vector.load %arg6[%37, %c0_29, %c0_30] : memref<8x16x128xbf16, #tpu.memory_space<vmem>>, vector<1x16x128xbf16>
    %39 = vector.shape_cast %38 : vector<1x16x128xbf16> to vector<16x128xbf16>
    %40 = vector.shape_cast %36 : vector<16x128xbf16> to vector<1x16x128xbf16>
    tpu.vector_store %arg6[%37, %c0_29, %c0_30], %40 {strides = array<i32>} : memref<8x16x128xbf16, #tpu.memory_space<vmem>>, vector<1x16x128xbf16>,
    %c2_i32 = arith.constant 2 : i32
    %c0_31 = arith.constant 0 : index
    %c0_32 = arith.constant 0 : index
    %41 = vector.load %arg7[%c0_31, %c0_32] : memref<16x128xf32, #tpu.memory_space<vmem>>, vector<16x128xf32>
    %42 = arith.index_cast %c2_i32 : i32 to index
    %c0_33 = arith.constant 0 : index
    %c0_34 = arith.constant 0 : index
    %43 = vector.load %arg8[%42, %c0_33, %c0_34] : memref<8x16x128xf32, #tpu.memory_space<vmem>>, vector<1x16x128xf32>
    %44 = vector.shape_cast %43 : vector<1x16x128xf32> to vector<16x128xf32>
    %45 = arith.truncf %41 : vector<16x128xf32> to vector<16x128xbf16>
    %cst_35 = arith.constant dense<0.000000e+00> : vector<16x128xf32>
    %46 = tpu.matmul %45, %12, %cst_35 {dimension_numbers = #tpu.dot_dimension_numbers<[1], [0], [0], [1], [0, 0, 1, 1], [], []>} : vector<16x128xbf16>, vector<128x128xbf16>, vector<16x128xf32> -> vector<16x128xf32>
    %47 = arith.addf %44, %46 : vector<16x128xf32>
    %48 = math.tanh %47 : vector<16x128xf32>
    %c0_36 = arith.constant 0 : index
    %c0_37 = arith.constant 0 : index
    %49 = vector.load %arg7[%c0_36, %c0_37] : memref<16x128xf32, #tpu.memory_space<vmem>>, vector<16x128xf32>
    tpu.vector_store %arg7[%c0_36, %c0_37], %48 {strides = array<i32>} : memref<16x128xf32, #tpu.memory_space<vmem>>, vector<16x128xf32>,
    %50 = arith.truncf %48 : vector<16x128xf32> to vector<16x128xbf16>
    %51 = arith.index_cast %c2_i32 : i32 to index
    %c0_38 = arith.constant 0 : index
    %c0_39 = arith.constant 0 : index
    %52 = vector.load %arg6[%51, %c0_38, %c0_39] : memref<8x16x128xbf16, #tpu.memory_space<vmem>>, vector<1x16x128xbf16>
    %53 = vector.shape_cast %52 : vector<1x16x128xbf16> to vector<16x128xbf16>
    %54 = vector.shape_cast %50 : vector<16x128xbf16> to vector<1x16x128xbf16>
    tpu.vector_store %arg6[%51, %c0_38, %c0_39], %54 {strides = array<i32>} : memref<8x16x128xbf16, #tpu.memory_space<vmem>>, vector<1x16x128xbf16>,
    %c3_i32 = arith.constant 3 : i32
    %c0_40 = arith.constant 0 : index
    %c0_41 = arith.constant 0 : index
    %55 = vector.load %arg7[%c0_40, %c0_41] : memref<16x128xf32, #tpu.memory_space<vmem>>, vector<16x128xf32>
    %56 = arith.index_cast %c3_i32 : i32 to index
    %c0_42 = arith.constant 0 : index
    %c0_43 = arith.constant 0 : index
    %57 = vector.load %arg8[%56, %c0_42, %c0_43] : memref<8x16x128xf32, #tpu.memory_space<vmem>>, vector<1x16x128xf32>
    %58 = vector.shape_cast %57 : vector<1x16x128xf32> to vector<16x128xf32>
    %59 = arith.truncf %55 : vector<16x128xf32> to vector<16x128xbf16>
    %cst_44 = arith.constant dense<0.000000e+00> : vector<16x128xf32>
    %60 = tpu.matmul %59, %12, %cst_44 {dimension_numbers = #tpu.dot_dimension_numbers<[1], [0], [0], [1], [0, 0, 1, 1], [], []>} : vector<16x128xbf16>, vector<128x128xbf16>, vector<16x128xf32> -> vector<16x128xf32>
    %61 = arith.addf %58, %60 : vector<16x128xf32>
    %62 = math.tanh %61 : vector<16x128xf32>
    %c0_45 = arith.constant 0 : index
    %c0_46 = arith.constant 0 : index
    %63 = vector.load %arg7[%c0_45, %c0_46] : memref<16x128xf32, #tpu.memory_space<vmem>>, vector<16x128xf32>
    tpu.vector_store %arg7[%c0_45, %c0_46], %62 {strides = array<i32>} : memref<16x128xf32, #tpu.memory_space<vmem>>, vector<16x128xf32>,
    %64 = arith.truncf %62 : vector<16x128xf32> to vector<16x128xbf16>
    %65 = arith.index_cast %c3_i32 : i32 to index
    %c0_47 = arith.constant 0 : index
    %c0_48 = arith.constant 0 : index
    %66 = vector.load %arg6[%65, %c0_47, %c0_48] : memref<8x16x128xbf16, #tpu.memory_space<vmem>>, vector<1x16x128xbf16>
    %67 = vector.shape_cast %66 : vector<1x16x128xbf16> to vector<16x128xbf16>
    %68 = vector.shape_cast %64 : vector<16x128xbf16> to vector<1x16x128xbf16>
    tpu.vector_store %arg6[%65, %c0_47, %c0_48], %68 {strides = array<i32>} : memref<8x16x128xbf16, #tpu.memory_space<vmem>>, vector<1x16x128xbf16>,
    %c4_i32 = arith.constant 4 : i32
    %c0_49 = arith.constant 0 : index
    %c0_50 = arith.constant 0 : index
    %69 = vector.load %arg7[%c0_49, %c0_50] : memref<16x128xf32, #tpu.memory_space<vmem>>, vector<16x128xf32>
    %70 = arith.index_cast %c4_i32 : i32 to index
    %c0_51 = arith.constant 0 : index
    %c0_52 = arith.constant 0 : index
    %71 = vector.load %arg8[%70, %c0_51, %c0_52] : memref<8x16x128xf32, #tpu.memory_space<vmem>>, vector<1x16x128xf32>
    %72 = vector.shape_cast %71 : vector<1x16x128xf32> to vector<16x128xf32>
    %73 = arith.truncf %69 : vector<16x128xf32> to vector<16x128xbf16>
    %cst_53 = arith.constant dense<0.000000e+00> : vector<16x128xf32>
    %74 = tpu.matmul %73, %12, %cst_53 {dimension_numbers = #tpu.dot_dimension_numbers<[1], [0], [0], [1], [0, 0, 1, 1], [], []>} : vector<16x128xbf16>, vector<128x128xbf16>, vector<16x128xf32> -> vector<16x128xf32>
    %75 = arith.addf %72, %74 : vector<16x128xf32>
    %76 = math.tanh %75 : vector<16x128xf32>
    %c0_54 = arith.constant 0 : index
    %c0_55 = arith.constant 0 : index
    %77 = vector.load %arg7[%c0_54, %c0_55] : memref<16x128xf32, #tpu.memory_space<vmem>>, vector<16x128xf32>
    tpu.vector_store %arg7[%c0_54, %c0_55], %76 {strides = array<i32>} : memref<16x128xf32, #tpu.memory_space<vmem>>, vector<16x128xf32>,
    %78 = arith.truncf %76 : vector<16x128xf32> to vector<16x128xbf16>
    %79 = arith.index_cast %c4_i32 : i32 to index
    %c0_56 = arith.constant 0 : index
    %c0_57 = arith.constant 0 : index
    %80 = vector.load %arg6[%79, %c0_56, %c0_57] : memref<8x16x128xbf16, #tpu.memory_space<vmem>>, vector<1x16x128xbf16>
    %81 = vector.shape_cast %80 : vector<1x16x128xbf16> to vector<16x128xbf16>
    %82 = vector.shape_cast %78 : vector<16x128xbf16> to vector<1x16x128xbf16>
    tpu.vector_store %arg6[%79, %c0_56, %c0_57], %82 {strides = array<i32>} : memref<8x16x128xbf16, #tpu.memory_space<vmem>>, vector<1x16x128xbf16>,
    %c5_i32 = arith.constant 5 : i32
    %c0_58 = arith.constant 0 : index
    %c0_59 = arith.constant 0 : index
    %83 = vector.load %arg7[%c0_58, %c0_59] : memref<16x128xf32, #tpu.memory_space<vmem>>, vector<16x128xf32>
    %84 = arith.index_cast %c5_i32 : i32 to index
    %c0_60 = arith.constant 0 : index
    %c0_61 = arith.constant 0 : index
    %85 = vector.load %arg8[%84, %c0_60, %c0_61] : memref<8x16x128xf32, #tpu.memory_space<vmem>>, vector<1x16x128xf32>
    %86 = vector.shape_cast %85 : vector<1x16x128xf32> to vector<16x128xf32>
    %87 = arith.truncf %83 : vector<16x128xf32> to vector<16x128xbf16>
    %cst_62 = arith.constant dense<0.000000e+00> : vector<16x128xf32>
    %88 = tpu.matmul %87, %12, %cst_62 {dimension_numbers = #tpu.dot_dimension_numbers<[1], [0], [0], [1], [0, 0, 1, 1], [], []>} : vector<16x128xbf16>, vector<128x128xbf16>, vector<16x128xf32> -> vector<16x128xf32>
    %89 = arith.addf %86, %88 : vector<16x128xf32>
    %90 = math.tanh %89 : vector<16x128xf32>
    %c0_63 = arith.constant 0 : index
    %c0_64 = arith.constant 0 : index
    %91 = vector.load %arg7[%c0_63, %c0_64] : memref<16x128xf32, #tpu.memory_space<vmem>>, vector<16x128xf32>
    tpu.vector_store %arg7[%c0_63, %c0_64], %90 {strides = array<i32>} : memref<16x128xf32, #tpu.memory_space<vmem>>, vector<16x128xf32>,
    %92 = arith.truncf %90 : vector<16x128xf32> to vector<16x128xbf16>
    %93 = arith.index_cast %c5_i32 : i32 to index
    %c0_65 = arith.constant 0 : index
    %c0_66 = arith.constant 0 : index
    %94 = vector.load %arg6[%93, %c0_65, %c0_66] : memref<8x16x128xbf16, #tpu.memory_space<vmem>>, vector<1x16x128xbf16>
    %95 = vector.shape_cast %94 : vector<1x16x128xbf16> to vector<16x128xbf16>
    %96 = vector.shape_cast %92 : vector<16x128xbf16> to vector<1x16x128xbf16>
    tpu.vector_store %arg6[%93, %c0_65, %c0_66], %96 {strides = array<i32>} : memref<8x16x128xbf16, #tpu.memory_space<vmem>>, vector<1x16x128xbf16>,
    %c6_i32 = arith.constant 6 : i32
    %c0_67 = arith.constant 0 : index
    %c0_68 = arith.constant 0 : index
    %97 = vector.load %arg7[%c0_67, %c0_68] : memref<16x128xf32, #tpu.memory_space<vmem>>, vector<16x128xf32>
    %98 = arith.index_cast %c6_i32 : i32 to index
    %c0_69 = arith.constant 0 : index
    %c0_70 = arith.constant 0 : index
    %99 = vector.load %arg8[%98, %c0_69, %c0_70] : memref<8x16x128xf32, #tpu.memory_space<vmem>>, vector<1x16x128xf32>
    %100 = vector.shape_cast %99 : vector<1x16x128xf32> to vector<16x128xf32>
    %101 = arith.truncf %97 : vector<16x128xf32> to vector<16x128xbf16>
    %cst_71 = arith.constant dense<0.000000e+00> : vector<16x128xf32>
    %102 = tpu.matmul %101, %12, %cst_71 {dimension_numbers = #tpu.dot_dimension_numbers<[1], [0], [0], [1], [0, 0, 1, 1], [], []>} : vector<16x128xbf16>, vector<128x128xbf16>, vector<16x128xf32> -> vector<16x128xf32>
    %103 = arith.addf %100, %102 : vector<16x128xf32>
    %104 = math.tanh %103 : vector<16x128xf32>
    %c0_72 = arith.constant 0 : index
    %c0_73 = arith.constant 0 : index
    %105 = vector.load %arg7[%c0_72, %c0_73] : memref<16x128xf32, #tpu.memory_space<vmem>>, vector<16x128xf32>
    tpu.vector_store %arg7[%c0_72, %c0_73], %104 {strides = array<i32>} : memref<16x128xf32, #tpu.memory_space<vmem>>, vector<16x128xf32>,
    %106 = arith.truncf %104 : vector<16x128xf32> to vector<16x128xbf16>
    %107 = arith.index_cast %c6_i32 : i32 to index
    %c0_74 = arith.constant 0 : index
    %c0_75 = arith.constant 0 : index
    %108 = vector.load %arg6[%107, %c0_74, %c0_75] : memref<8x16x128xbf16, #tpu.memory_space<vmem>>, vector<1x16x128xbf16>
    %109 = vector.shape_cast %108 : vector<1x16x128xbf16> to vector<16x128xbf16>
    %110 = vector.shape_cast %106 : vector<16x128xbf16> to vector<1x16x128xbf16>
    tpu.vector_store %arg6[%107, %c0_74, %c0_75], %110 {strides = array<i32>} : memref<8x16x128xbf16, #tpu.memory_space<vmem>>, vector<1x16x128xbf16>,
    %c7_i32 = arith.constant 7 : i32
    %c0_76 = arith.constant 0 : index
    %c0_77 = arith.constant 0 : index
    %111 = vector.load %arg7[%c0_76, %c0_77] : memref<16x128xf32, #tpu.memory_space<vmem>>, vector<16x128xf32>
    %112 = arith.index_cast %c7_i32 : i32 to index
    %c0_78 = arith.constant 0 : index
    %c0_79 = arith.constant 0 : index
    %113 = vector.load %arg8[%112, %c0_78, %c0_79] : memref<8x16x128xf32, #tpu.memory_space<vmem>>, vector<1x16x128xf32>
    %114 = vector.shape_cast %113 : vector<1x16x128xf32> to vector<16x128xf32>
    %115 = arith.truncf %111 : vector<16x128xf32> to vector<16x128xbf16>
    %cst_80 = arith.constant dense<0.000000e+00> : vector<16x128xf32>
    %116 = tpu.matmul %115, %12, %cst_80 {dimension_numbers = #tpu.dot_dimension_numbers<[1], [0], [0], [1], [0, 0, 1, 1], [], []>} : vector<16x128xbf16>, vector<128x128xbf16>, vector<16x128xf32> -> vector<16x128xf32>
    %117 = arith.addf %114, %116 : vector<16x128xf32>
    %118 = math.tanh %117 : vector<16x128xf32>
    %c0_81 = arith.constant 0 : index
    %c0_82 = arith.constant 0 : index
    %119 = vector.load %arg7[%c0_81, %c0_82] : memref<16x128xf32, #tpu.memory_space<vmem>>, vector<16x128xf32>
    tpu.vector_store %arg7[%c0_81, %c0_82], %118 {strides = array<i32>} : memref<16x128xf32, #tpu.memory_space<vmem>>, vector<16x128xf32>,
    %120 = arith.truncf %118 : vector<16x128xf32> to vector<16x128xbf16>
    %121 = arith.index_cast %c7_i32 : i32 to index
    %c0_83 = arith.constant 0 : index
    %c0_84 = arith.constant 0 : index
    %122 = vector.load %arg6[%121, %c0_83, %c0_84] : memref<8x16x128xbf16, #tpu.memory_space<vmem>>, vector<1x16x128xbf16>
    %123 = vector.shape_cast %122 : vector<1x16x128xbf16> to vector<16x128xbf16>
    %124 = vector.shape_cast %120 : vector<16x128xbf16> to vector<1x16x128xbf16>
    tpu.vector_store %arg6[%121, %c0_83, %c0_84], %124 {strides = array<i32>} : memref<8x16x128xbf16, #tpu.memory_space<vmem>>, vector<1x16x128xbf16>,
    %c8_i32 = arith.constant 8 : i32
    return
  }
  func.func @transform_0(%arg0: i32) -> (i32, i32, i32) {
    %c0_i32 = arith.constant 0 : i32
    %c0_i32_0 = arith.constant 0 : i32
    %c0_i32_1 = arith.constant 0 : i32
    return %arg0, %c0_i32, %c0_i32_0 : i32, i32, i32
  }
  func.func @transform_1(%arg0: i32) -> (i32, i32) {
    %c0_i32 = arith.constant 0 : i32
    %c0_i32_0 = arith.constant 0 : i32
    %c0_i32_1 = arith.constant 0 : i32
    return %c0_i32, %c0_i32_0 : i32, i32
  }
  func.func @transform_2(%arg0: i32) -> (i32, i32) {
    %c0_i32 = arith.constant 0 : i32
    %c0_i32_0 = arith.constant 0 : i32
    %c0_i32_1 = arith.constant 0 : i32
    return %c0_i32, %c0_i32_0 : i32, i32
  }
  func.func @transform_3(%arg0: i32) -> (i32, i32) {
    %c0_i32 = arith.constant 0 : i32
    %c0_i32_0 = arith.constant 0 : i32
    %c0_i32_1 = arith.constant 0 : i32
    return %c0_i32, %c0_i32_0 : i32, i32
  }
  func.func @transform_4(%arg0: i32) -> (i32, i32) {
    %c0_i32 = arith.constant 0 : i32
    %c0_i32_0 = arith.constant 0 : i32
    %c0_i32_1 = arith.constant 0 : i32
    return %c0_i32, %c0_i32_0 : i32, i32
  }
  func.func @transform_5(%arg0: i32) -> (i32, i32, i32) {
    %c0_i32 = arith.constant 0 : i32
    %c0_i32_0 = arith.constant 0 : i32
    %c0_i32_1 = arith.constant 0 : i32
    return %arg0, %c0_i32, %c0_i32_0 : i32, i32, i32
  }
}

</mosaic_0001>

<llo_original>
// kernel: tpu_custom_call.1
$region0: #{tpu_custom_call.1}
  #allocation0 [shape = 'u32[]', space=smem, size = 0x4, offset = 0x4, fixed_abs, tag = 'smem constant byte address 0x4 - core index']
  #allocation1 [shape = 'u32[144,128]{1,0:T(1,128)}', space=vmem, size = 0x12000, scoped, tag = 'internal scratch']
  #allocation2 [shape = 'f32[16,128]{1,0:T(8,128)}', space=vmem, size = 0x2000, scoped, tag = 'scratch operand']
  #allocation3 [shape = 'f32[8,16,128]{2,1,0:T(8,128)}', space=vmem, size = 0x10000, scoped, tag = 'scratch operand']
  %s0 = inlined_call_operand.hbm [shape: bf16[8,16,128], index: 0, kind: input, shape index: {}]
  %s1 = inlined_call_operand.hbm [shape: bf16[128,128], index: 1, kind: input, shape index: {}]
  %s2 = inlined_call_operand.vmem [shape: f32[1,128], index: 2, kind: input, shape index: {}]
  %s3 = inlined_call_operand.hbm [shape: bf16[128,128], index: 3, kind: input, shape index: {}]
  %s4 = inlined_call_operand.hbm [shape: f32[16,128], index: 4, kind: input, shape index: {}]
  %s5 = inlined_call_operand.hbm [shape: bf16[8,16,128], index: 5, kind: output, shape index: {}]
  %s6 = sld [smem:[#allocation0]]
  $region50: #{tpu_custom_call.1} parent=0
    _
  %s8 = ssub.s32 1, %s6
  %s9 = scalar_select 0, %s8, %s6
  $region1: #{tpu_custom_call.1} parent=0
    #allocation4 [shape = 'u8[32768]{0}', space=vmem, size = 0x8000, scoped, tag = 'input window, operand 0, single buffered']
    #allocation5 [shape = 's32[1]{0}', space=sflag, size = 0x4, scoped, tag = 'scoped memory for tpu_custom_call.1']
    #allocation6 [shape = 's32[1]{0}', space=sflag, size = 0x4, scoped, tag = 'scoped memory for tpu_custom_call.1']
    #allocation7 [shape = 'u8[32768]{0}', space=vmem, size = 0x8000, scoped, tag = 'input window, operand 1, single buffered']
    #allocation8 [shape = 's32[1]{0}', space=sflag, size = 0x4, scoped, tag = 'scoped memory for tpu_custom_call.1']
    #allocation9 [shape = 'u8[32768]{0}', space=vmem, size = 0x8000, scoped, tag = 'input window, operand 3, single buffered']
    #allocation10 [shape = 'u8[8192]{0}', space=vmem, size = 0x2000, scoped, tag = 'input window, operand 4, single buffered']
    #allocation11 [shape = 's32[1]{0}', space=sflag, size = 0x4, scoped, tag = 'scoped memory for tpu_custom_call.1']
    #allocation12 [shape = 'u8[32768]{0}', space=vmem, size = 0x8000, scoped, tag = 'output window, operand 0, single buffered']
    %10 = vsyncpa [#allocation5], 0
    %11 = vsyncpa [#allocation8], 0
    %12 = vsyncpa [#allocation11], 0
    %13 = vsyncpa [#allocation6], 0
    // Predicated region
    $region2: #{tpu_custom_call.1} parent=1 // pred_check
      _
    $region3: #{tpu_custom_call.1} parent=1 // pred_check_branch
      %15 = sbr.rel (0) target = $region5
    $region4: #{tpu_custom_call.1} parent=1 // pred_region
      %s17 = ssub.s32 1024, 1024
      %18 = vsyncadd [#allocation5], %s17
      %s19 = sshll.u32 [#allocation4], 4
      %s20 = int_to_ptr.vmem [resolvable:$true] %s19
      %25 = dma.hbm_to_vmem [thread:$0]  %s0, 1024, %s20, [#allocation5], 64, 64, 4
    $region5: #{tpu_custom_call.1} parent=1 // pred_fallthru
      _
    // Predicated region
    $region6: #{tpu_custom_call.1} parent=1 // pred_check
      _
    $region7: #{tpu_custom_call.1} parent=1 // pred_check_branch
      %27 = sbr.rel (0) target = $region9
    $region8: #{tpu_custom_call.1} parent=1 // pred_region
      %s29 = ssub.s32 1024, 1024
      %30 = vsyncadd [#allocation8], %s29
      %s31 = sshll.u32 [#allocation7], 4
      %s32 = int_to_ptr.vmem [resolvable:$true] %s31
      %37 = dma.hbm_to_vmem [thread:$0]  %s1, 1024, %s32, [#allocation8], 64, 64, 4
    $region9: #{tpu_custom_call.1} parent=1 // pred_fallthru
      _
    // Predicated region
    $region10: #{tpu_custom_call.1} parent=1 // pred_check
      _
    $region11: #{tpu_custom_call.1} parent=1 // pred_check_branch
      %39 = sbr.rel (0) target = $region13
    $region12: #{tpu_custom_call.1} parent=1 // pred_region
      _
    $region13: #{tpu_custom_call.1} parent=1 // pred_fallthru
      _
    // Predicated region
    $region14: #{tpu_custom_call.1} parent=1 // pred_check
      _
    $region15: #{tpu_custom_call.1} parent=1 // pred_check_branch
      %41 = sbr.rel (0) target = $region17
    $region16: #{tpu_custom_call.1} parent=1 // pred_region
      %s43 = ssub.s32 1024, 1024
      %44 = vsyncadd [#allocation8], %s43
      %s45 = sshll.u32 [#allocation9], 4
      %s46 = int_to_ptr.vmem [resolvable:$true] %s45
      %51 = dma.hbm_to_vmem [thread:$0]  %s3, 1024, %s46, [#allocation8], 64, 64, 4
    $region17: #{tpu_custom_call.1} parent=1 // pred_fallthru
      _
    // Predicated region
    $region18: #{tpu_custom_call.1} parent=1 // pred_check
      _
    $region19: #{tpu_custom_call.1} parent=1 // pred_check_branch
      %53 = sbr.rel (0) target = $region21
    $region20: #{tpu_custom_call.1} parent=1 // pred_region
      %s55 = ssub.s32 256, 256
      %56 = vsyncadd [#allocation11], %s55
      %s57 = sshll.u32 [#allocation10], 4
      %s58 = int_to_ptr.vmem [resolvable:$true] %s57
      %63 = dma.hbm_to_vmem [thread:$0]  %s4, 256, %s58, [#allocation11], 128, 128, 8
    $region21: #{tpu_custom_call.1} parent=1 // pred_fallthru
      _
    // Predicated region
    $region22: #{tpu_custom_call.1} parent=1 // pred_check
      _
    $region23: #{tpu_custom_call.1} parent=1 // pred_check_branch
      %65 = sbr.rel (0) target = $region25
    $region24: #{tpu_custom_call.1} parent=1 // pred_region
      %66 = dma.done [#allocation5], 1024
    $region25: #{tpu_custom_call.1} parent=1 // pred_fallthru
      _
    // Predicated region
    $region26: #{tpu_custom_call.1} parent=1 // pred_check
      _
    $region27: #{tpu_custom_call.1} parent=1 // pred_check_branch
      %68 = sbr.rel (0) target = $region29
    $region28: #{tpu_custom_call.1} parent=1 // pred_region
      %69 = dma.done [#allocation8], 1024
    $region29: #{tpu_custom_call.1} parent=1 // pred_fallthru
      _
    // Predicated region
    $region30: #{tpu_custom_call.1} parent=1 // pred_check
      _
    $region31: #{tpu_custom_call.1} parent=1 // pred_check_branch
      %71 = sbr.rel (0) target = $region33
    $region32: #{tpu_custom_call.1} parent=1 // pred_region
      %72 = dma.done [#allocation8], 1024
    $region33: #{tpu_custom_call.1} parent=1 // pred_fallthru
      _
    // Predicated region
    $region34: #{tpu_custom_call.1} parent=1 // pred_check
      _
    $region35: #{tpu_custom_call.1} parent=1 // pred_check_branch
      %74 = sbr.rel (0) target = $region37
    $region36: #{tpu_custom_call.1} parent=1 // pred_region
      %75 = dma.done [#allocation11], 256
    $region37: #{tpu_custom_call.1} parent=1 // pred_fallthru
      _
    %p77 = scmp.eq.s32.totalorder 0, 0
    // Predicated region
    $region38: #{tpu_custom_call.1} parent=1 // pred_check
      %p78 = pneg %p77
    $region39: #{tpu_custom_call.1} parent=1 // pred_check_branch
      %80 = sbr.rel (%p78) target = $region41
    $region40: #{tpu_custom_call.1} parent=1 // pred_region
      %v81 = vld [vmem:[#allocation10] sm:$0xff]
      %v82 = vld [vmem:[#allocation10 + $0x8] sm:$0xff]
      %83 = vst [vmem:[#allocation2] sm:$0xff] %v81
      %84 = vst [vmem:[#allocation2 + $0x8] sm:$0xff] %v82
    $region41: #{tpu_custom_call.1} parent=1 // pred_fallthru
      _
    %v85 = vld [vmem:[#allocation4] sm:$0xf]
    %v86 = vld [vmem:[#allocation4 + $0x4] sm:$0xf]
    %v87 = vld [vmem:[#allocation4 + $0x8] sm:$0xf]
    %v88 = vld [vmem:[#allocation4 + $0xc] sm:$0xf]
    %v89 = vld [vmem:[#allocation4 + $0x10] sm:$0xf]
    %v90 = vld [vmem:[#allocation4 + $0x14] sm:$0xf]
    %v91 = vld [vmem:[#allocation4 + $0x18] sm:$0xf]
    %v92 = vld [vmem:[#allocation4 + $0x1c] sm:$0xf]
    %v93 = vld [vmem:[#allocation4 + $0x20] sm:$0xf]
    %v94 = vld [vmem:[#allocation4 + $0x24] sm:$0xf]
    %v95 = vld [vmem:[#allocation4 + $0x28] sm:$0xf]
    %v96 = vld [vmem:[#allocation4 + $0x2c] sm:$0xf]
    %v97 = vld [vmem:[#allocation4 + $0x30] sm:$0xf]
    %v98 = vld [vmem:[#allocation4 + $0x34] sm:$0xf]
    %v99 = vld [vmem:[#allocation4 + $0x38] sm:$0xf]
    %v100 = vld [vmem:[#allocation4 + $0x3c] sm:$0xf]
    %v101 = vld [vmem:[#allocation7] sm:$0xf]
    %v102 = vld [vmem:[#allocation7 + $0x4] sm:$0xf]
    %v103 = vld [vmem:[#allocation7 + $0x8] sm:$0xf]
    %v104 = vld [vmem:[#allocation7 + $0xc] sm:$0xf]
    %v105 = vld [vmem:[#allocation7 + $0x10] sm:$0xf]
    %v106 = vld [vmem:[#allocation7 + $0x14] sm:$0xf]
    %v107 = vld [vmem:[#allocation7 + $0x18] sm:$0xf]
    %v108 = vld [vmem:[#allocation7 + $0x1c] sm:$0xf]
    %v109 = vld [vmem:[#allocation7 + $0x20] sm:$0xf]
    %v110 = vld [vmem:[#allocation7 + $0x24] sm:$0xf]
    %v111 = vld [vmem:[#allocation7 + $0x28] sm:$0xf]
    %v112 = vld [vmem:[#allocation7 + $0x2c] sm:$0xf]
    %v113 = vld [vmem:[#allocation7 + $0x30] sm:$0xf]
    %v114 = vld [vmem:[#allocation7 + $0x34] sm:$0xf]
    %v115 = vld [vmem:[#allocation7 + $0x38] sm:$0xf]
    %v116 = vld [vmem:[#allocation7 + $0x3c] sm:$0xf]
    %v117 = vld [vmem:[%s2] sm:$0x1]
    %v119 = vlaneseq
    %v120 = vshrl.u32 %v119, 7
    %v121 = vsub.s32 0, %v120
    %v122 = vrot.slane %v117, %v121
    %v140 = vunpack.c.l.b16 %v85
    %v141 = vunpack.c.l.b16 %v86
    %v142 = vunpack.c.l.b16 %v87
    %v143 = vunpack.c.l.b16 %v88
    %v144 = vunpack.c.l.b16 %v89
    %v145 = vunpack.c.l.b16 %v90
    %v146 = vunpack.c.l.b16 %v91
    %v147 = vunpack.c.l.b16 %v92
    %v148 = vunpack.c.l.b16 %v93
    %v149 = vunpack.c.l.b16 %v94
    %v150 = vunpack.c.l.b16 %v95
    %v151 = vunpack.c.l.b16 %v96
    %v152 = vunpack.c.l.b16 %v97
    %v153 = vunpack.c.l.b16 %v98
    %v154 = vunpack.c.l.b16 %v99
    %v155 = vunpack.c.l.b16 %v100
    %v156 = vpack.c.b16 %v141, %v140
    %v157 = vpack.c.b16 %v143, %v142
    %v158 = vpack.c.b16 %v145, %v144
    %v159 = vpack.c.b16 %v147, %v146
    %v160 = vpack.c.b16 %v149, %v148
    %v161 = vpack.c.b16 %v151, %v150
    %v162 = vpack.c.b16 %v153, %v152
    %v163 = vpack.c.b16 %v155, %v154
    %v188 = vunpack.c.l.b16 %v101
    %v189 = vunpack.c.l.b16 %v102
    %v190 = vunpack.c.l.b16 %v103
    %v191 = vunpack.c.l.b16 %v104
    %v192 = vunpack.c.l.b16 %v105
    %v193 = vunpack.c.l.b16 %v106
    %v194 = vunpack.c.l.b16 %v107
    %v195 = vunpack.c.l.b16 %v108
    %v196 = vunpack.c.l.b16 %v109
    %v197 = vunpack.c.l.b16 %v110
    %v198 = vunpack.c.l.b16 %v111
    %v199 = vunpack.c.l.b16 %v112
    %v200 = vunpack.c.l.b16 %v113
    %v201 = vunpack.c.l.b16 %v114
    %v202 = vunpack.c.l.b16 %v115
    %v203 = vunpack.c.l.b16 %v116
    %v204 = vpack.c.b16 %v189, %v188
    %v205 = vpack.c.b16 %v191, %v190
    %v206 = vpack.c.b16 %v193, %v192
    %v207 = vpack.c.b16 %v195, %v194
    %v208 = vpack.c.b16 %v197, %v196
    %v209 = vpack.c.b16 %v199, %v198
    %v210 = vpack.c.b16 %v201, %v200
    %v211 = vpack.c.b16 %v203, %v202
    %220 = vmatprep.subr.bf16.mxu0 0
    %221 = vmatpush1.bf16.msra.mxu0 %v211
    %222 = vmatprep.subr.bf16.mxu0 0
    %223 = vmatpush1.bf16.msra.mxu0 %v210
    %224 = vmatprep.subr.bf16.mxu0 0
    %225 = vmatpush1.bf16.msra.mxu0 %v209
    %226 = vmatprep.subr.bf16.mxu0 0
    %227 = vmatpush1.bf16.msra.mxu0 %v208
    %228 = vmatprep.subr.bf16.mxu0 0
    %229 = vmatpush1.bf16.msra.mxu0 %v207
    %230 = vmatprep.subr.bf16.mxu0 0
    %231 = vmatpush1.bf16.msra.mxu0 %v206
    %232 = vmatprep.subr.bf16.mxu0 0
    %233 = vmatpush1.bf16.msra.mxu0 %v205
    %234 = vmatprep.subr.bf16.mxu0 0
    %235 = vmatpush1.bf16.msra.mxu0 %v204
    %236 = vmatprep.subr.bf16.mxu0 0
    %237 = vmatpush2.bf16.msra.mxu0 0
    %238 = vmatprep.subr.bf16.mxu0 0
    %239 = vmatpush2.bf16.msra.mxu0 0
    %240 = vmatprep.subr.bf16.mxu0 0
    %241 = vmatpush2.bf16.msra.mxu0 0
    %242 = vmatprep.subr.bf16.mxu0 0
    %243 = vmatpush2.bf16.msra.mxu0 0
    %244 = vmatprep.subr.bf16.mxu0 0
    %245 = vmatpush2.bf16.msra.mxu0 0
    %246 = vmatprep.subr.bf16.mxu0 0
    %247 = vmatpush2.bf16.msra.mxu0 0
    %248 = vmatprep.subr.bf16.mxu0 0
    %249 = vmatpush2.bf16.msra.mxu0 0
    %250 = vmatprep.subr.bf16.mxu0 0
    %251 = vmatpush2.bf16.msra.mxu0 0
    %252 = vmatprep.mubr.bf16.mxu0 0
    %253 = vmatmul.mubr.bf16.gmra.mxu0 %v156
    %v254 = vpop.f32.mrf.mxu0
    %v255 = vadd.f32 %v122, %v254
    %v256 = vpop.f32.mrf.mxu0
    %v257 = vpop.f32.mrf.mxu0
    %v258 = vadd.f32 %v122, %v257
    %v259 = vpop.f32.mrf.mxu0
    %260 = vmatprep.mubr.bf16.mxu0 0
    %261 = vmatmul.mubr.bf16.gmra.mxu0 %v157
    %v262 = vpop.f32.mrf.mxu0
    %v263 = vadd.f32 %v122, %v262
    %v264 = vpop.f32.mrf.mxu0
    %v265 = vpop.f32.mrf.mxu0
    %v266 = vadd.f32 %v122, %v265
    %v267 = vpop.f32.mrf.mxu0
    %268 = vmatprep.mubr.bf16.mxu0 0
    %269 = vmatmul.mubr.bf16.gmra.mxu0 %v158
    %v270 = vpop.f32.mrf.mxu0
    %v271 = vadd.f32 %v122, %v270
    %v272 = vpop.f32.mrf.mxu0
    %v273 = vpop.f32.mrf.mxu0
    %v274 = vadd.f32 %v122, %v273
    %v275 = vpop.f32.mrf.mxu0
    %276 = vmatprep.mubr.bf16.mxu0 0
    %277 = vmatmul.mubr.bf16.gmra.mxu0 %v159
    %v278 = vpop.f32.mrf.mxu0
    %v279 = vadd.f32 %v122, %v278
    %v280 = vpop.f32.mrf.mxu0
    %v281 = vpop.f32.mrf.mxu0
    %v282 = vadd.f32 %v122, %v281
    %v283 = vpop.f32.mrf.mxu0
    %284 = vmatprep.mubr.bf16.mxu0 0
    %285 = vmatmul.mubr.bf16.gmra.mxu0 %v160
    %v286 = vpop.f32.mrf.mxu0
    %v287 = vadd.f32 %v122, %v286
    %v288 = vpop.f32.mrf.mxu0
    %v289 = vpop.f32.mrf.mxu0
    %v290 = vadd.f32 %v122, %v289
    %v291 = vpop.f32.mrf.mxu0
    %292 = vmatprep.mubr.bf16.mxu0 0
    %293 = vmatmul.mubr.bf16.gmra.mxu0 %v161
    %v294 = vpop.f32.mrf.mxu0
    %v295 = vadd.f32 %v122, %v294
    %v296 = vpop.f32.mrf.mxu0
    %v297 = vpop.f32.mrf.mxu0
    %v298 = vadd.f32 %v122, %v297
    %v299 = vpop.f32.mrf.mxu0
    %300 = vmatprep.mubr.bf16.mxu0 0
    %301 = vmatmul.mubr.bf16.gmra.mxu0 %v162
    %v302 = vpop.f32.mrf.mxu0
    %v303 = vadd.f32 %v122, %v302
    %v304 = vpop.f32.mrf.mxu0
    %v305 = vpop.f32.mrf.mxu0
    %v306 = vadd.f32 %v122, %v305
    %v307 = vpop.f32.mrf.mxu0
    %308 = vmatprep.mubr.bf16.mxu0 0
    %309 = vmatmul.mubr.bf16.gmra.mxu0 %v163
    %v310 = vpop.f32.mrf.mxu0
    %v311 = vadd.f32 %v122, %v310
    %v312 = vpop.f32.mrf.mxu0
    %v313 = vpop.f32.mrf.mxu0
    %v314 = vadd.f32 %v122, %v313
    %v315 = vpop.f32.mrf.mxu0
    %316 = vdwg.mxu0
    %317 = vst [vmem:[#allocation3] sm:$0xff] %v255
    %318 = vst [vmem:[#allocation3 + $0x8] sm:$0xff] %v258
    %319 = vst [vmem:[#allocation3 + $0x10] sm:$0xff] %v263
    %320 = vst [vmem:[#allocation3 + $0x18] sm:$0xff] %v266
    %321 = vst [vmem:[#allocation3 + $0x20] sm:$0xff] %v271
    %322 = vst [vmem:[#allocation3 + $0x28] sm:$0xff] %v274
    %323 = vst [vmem:[#allocation3 + $0x30] sm:$0xff] %v279
    %324 = vst [vmem:[#allocation3 + $0x38] sm:$0xff] %v282
    %325 = vst [vmem:[#allocation3 + $0x40] sm:$0xff] %v287
    %326 = vst [vmem:[#allocation3 + $0x48] sm:$0xff] %v290
    %327 = vst [vmem:[#allocation3 + $0x50] sm:$0xff] %v295
    %328 = vst [vmem:[#allocation3 + $0x58] sm:$0xff] %v298
    %329 = vst [vmem:[#allocation3 + $0x60] sm:$0xff] %v303
    %330 = vst [vmem:[#allocation3 + $0x68] sm:$0xff] %v306
    %331 = vst [vmem:[#allocation3 + $0x70] sm:$0xff] %v311
    %332 = vst [vmem:[#allocation3 + $0x78] sm:$0xff] %v314
    %v333 = vld [vmem:[#allocation9] sm:$0xf]
    %v334 = vld [vmem:[#allocation9 + $0x4] sm:$0xf]
    %v335 = vld [vmem:[#allocation9 + $0x8] sm:$0xf]
    %v336 = vld [vmem:[#allocation9 + $0xc] sm:$0xf]
    %v337 = vld [vmem:[#allocation9 + $0x10] sm:$0xf]
    %v338 = vld [vmem:[#allocation9 + $0x14] sm:$0xf]
    %v339 = vld [vmem:[#allocation9 + $0x18] sm:$0xf]
    %v340 = vld [vmem:[#allocation9 + $0x1c] sm:$0xf]
    %v341 = vld [vmem:[#allocation9 + $0x20] sm:$0xf]
    %v342 = vld [vmem:[#allocation9 + $0x24] sm:$0xf]
    %v343 = vld [vmem:[#allocation9 + $0x28] sm:$0xf]
    %v344 = vld [vmem:[#allocation9 + $0x2c] sm:$0xf]
    %v345 = vld [vmem:[#allocation9 + $0x30] sm:$0xf]
    %v346 = vld [vmem:[#allocation9 + $0x34] sm:$0xf]
    %v347 = vld [vmem:[#allocation9 + $0x38] sm:$0xf]
    %v348 = vld [vmem:[#allocation9 + $0x3c] sm:$0xf]
    %v349 = vld [vmem:[#allocation2] sm:$0xff]
    %v350 = vld [vmem:[#allocation2 + $0x8] sm:$0xff]
    %v351 = vld [vmem:[#allocation3] sm:$0xff]
    %v352 = vld [vmem:[#allocation3 + $0x8] sm:$0xff]
    %v353 = vpack.c.bf16 %v350, %v349
    %v370 = vunpack.c.l.b16 %v333
    %v371 = vunpack.c.l.b16 %v334
    %v372 = vunpack.c.l.b16 %v335
    %v373 = vunpack.c.l.b16 %v336
    %v374 = vunpack.c.l.b16 %v337
    %v375 = vunpack.c.l.b16 %v338
    %v376 = vunpack.c.l.b16 %v339
    %v377 = vunpack.c.l.b16 %v340
    %v378 = vunpack.c.l.b16 %v341
    %v379 = vunpack.c.l.b16 %v342
    %v380 = vunpack.c.l.b16 %v343
    %v381 = vunpack.c.l.b16 %v344
    %v382 = vunpack.c.l.b16 %v345
    %v383 = vunpack.c.l.b16 %v346
    %v384 = vunpack.c.l.b16 %v347
    %v385 = vunpack.c.l.b16 %v348
    %v386 = vpack.c.b16 %v371, %v370
    %v387 = vpack.c.b16 %v373, %v372
    %v388 = vpack.c.b16 %v375, %v374
    %v389 = vpack.c.b16 %v377, %v376
    %v390 = vpack.c.b16 %v379, %v378
    %v391 = vpack.c.b16 %v381, %v380
    %v392 = vpack.c.b16 %v383, %v382
    %v393 = vpack.c.b16 %v385, %v384
    %402 = vmatprep.subr.bf16.mxu0 0
    %403 = vmatpush1.bf16.msra.mxu0 %v393
    %404 = vmatprep.subr.bf16.mxu0 0
    %405 = vmatpush1.bf16.msra.mxu0 %v392
    %406 = vmatprep.subr.bf16.mxu0 0
    %407 = vmatpush1.bf16.msra.mxu0 %v391
    %408 = vmatprep.subr.bf16.mxu0 0
    %409 = vmatpush1.bf16.msra.mxu0 %v390
    %410 = vmatprep.subr.bf16.mxu0 0
    %411 = vmatpush1.bf16.msra.mxu0 %v389
    %412 = vmatprep.subr.bf16.mxu0 0
    %413 = vmatpush1.bf16.msra.mxu0 %v388
    %414 = vmatprep.subr.bf16.mxu0 0
    %415 = vmatpush1.bf16.msra.mxu0 %v387
    %416 = vmatprep.subr.bf16.mxu0 0
    %417 = vmatpush1.bf16.msra.mxu0 %v386
    %418 = vmatprep.subr.bf16.mxu0 0
    %419 = vmatpush2.bf16.msra.mxu0 0
    %420 = vmatprep.subr.bf16.mxu0 0
    %421 = vmatpush2.bf16.msra.mxu0 0
    %422 = vmatprep.subr.bf16.mxu0 0
    %423 = vmatpush2.bf16.msra.mxu0 0
    %424 = vmatprep.subr.bf16.mxu0 0
    %425 = vmatpush2.bf16.msra.mxu0 0
    %426 = vmatprep.subr.bf16.mxu0 0
    %427 = vmatpush2.bf16.msra.mxu0 0
    %428 = vmatprep.subr.bf16.mxu0 0
    %429 = vmatpush2.bf16.msra.mxu0 0
    %430 = vmatprep.subr.bf16.mxu0 0
    %431 = vmatpush2.bf16.msra.mxu0 0
    %432 = vmatprep.subr.bf16.mxu0 0
    %433 = vmatpush2.bf16.msra.mxu0 0
    %434 = vmatprep.mubr.bf16.mxu0 0
    %435 = vmatmul.mubr.bf16.gmra.mxu0 %v353
    %v436 = vpop.f32.mrf.mxu0
    %v437 = vadd.f32 0.0, %v436
    %v438 = vpop.f32.mrf.mxu0
    %v439 = vpop.f32.mrf.mxu0
    %v440 = vadd.f32 0.0, %v439
    %v441 = vpop.f32.mrf.mxu0
    %442 = vdwg.mxu0
    %v443 = vadd.f32 %v351, %v437
    %v444 = vadd.f32 %v352, %v440
    %v445 = vtanh.pop %v443
    %v446 = vtanh.pop %v444
    %447 = vst [vmem:[#allocation2] sm:$0xff] %v445
    %448 = vst [vmem:[#allocation2 + $0x8] sm:$0xff] %v446
    %v449 = vpack.c.bf16 %v446, %v445
    %v451 = vunpack.c.l.b16 %v449
    %v452 = vunpack.c.h.b16 %v449
    %v453 = vpack.c.b16 %v451, %v451
    %v454 = vpack.c.b16 %v452, %v452
    %457 = vst [vmem:[#allocation12] sm:$0xf] %v453
    %458 = vst [vmem:[#allocation12 + $0x4] sm:$0xf] %v454
    %v459 = vld [vmem:[#allocation2] sm:$0xff]
    %v460 = vld [vmem:[#allocation2 + $0x8] sm:$0xff]
    %s461 = scalar_lea.vmem [#allocation3], 16
    %v462 = vld [vmem:[%s461] sm:$0xff]
    %v463 = vld [vmem:[%s461 + $0x8] sm:$0xff]
    %v464 = vpack.c.bf16 %v460, %v459
    %465 = vmatprep.subr.bf16.mxu0 0
    %466 = vmatpush1.bf16.msra.mxu0 %v393
    %467 = vmatprep.subr.bf16.mxu0 0
    %468 = vmatpush1.bf16.msra.mxu0 %v392
    %469 = vmatprep.subr.bf16.mxu0 0
    %470 = vmatpush1.bf16.msra.mxu0 %v391
    %471 = vmatprep.subr.bf16.mxu0 0
    %472 = vmatpush1.bf16.msra.mxu0 %v390
    %473 = vmatprep.subr.bf16.mxu0 0
    %474 = vmatpush1.bf16.msra.mxu0 %v389
    %475 = vmatprep.subr.bf16.mxu0 0
    %476 = vmatpush1.bf16.msra.mxu0 %v388
    %477 = vmatprep.subr.bf16.mxu0 0
    %478 = vmatpush1.bf16.msra.mxu0 %v387
    %479 = vmatprep.subr.bf16.mxu0 0
    %480 = vmatpush1.bf16.msra.mxu0 %v386
    %481 = vmatprep.subr.bf16.mxu0 0
    %482 = vmatpush2.bf16.msra.mxu0 0
    %483 = vmatprep.subr.bf16.mxu0 0
    %484 = vmatpush2.bf16.msra.mxu0 0
    %485 = vmatprep.subr.bf16.mxu0 0
    %486 = vmatpush2.bf16.msra.mxu0 0
    %487 = vmatprep.subr.bf16.mxu0 0
    %488 = vmatpush2.bf16.msra.mxu0 0
    %489 = vmatprep.subr.bf16.mxu0 0
    %490 = vmatpush2.bf16.msra.mxu0 0
    %491 = vmatprep.subr.bf16.mxu0 0
    %492 = vmatpush2.bf16.msra.mxu0 0
    %493 = vmatprep.subr.bf16.mxu0 0
    %494 = vmatpush2.bf16.msra.mxu0 0
    %495 = vmatprep.subr.bf16.mxu0 0
    %496 = vmatpush2.bf16.msra.mxu0 0
    %497 = vmatprep.mubr.bf16.mxu0 0
    %498 = vmatmul.mubr.bf16.gmra.mxu0 %v464
    %v499 = vpop.f32.mrf.mxu0
    %v500 = vadd.f32 0.0, %v499
    %v501 = vpop.f32.mrf.mxu0
    %v502 = vpop.f32.mrf.mxu0
    %v503 = vadd.f32 0.0, %v502
    %v504 = vpop.f32.mrf.mxu0
    %505 = vdwg.mxu0
    %v506 = vadd.f32 %v462, %v500
    %v507 = vadd.f32 %v463, %v503
    %v508 = vtanh.pop %v506
    %v509 = vtanh.pop %v507
    %510 = vst [vmem:[#allocation2] sm:$0xff] %v508
    %511 = vst [vmem:[#allocation2 + $0x8] sm:$0xff] %v509
    %v512 = vpack.c.bf16 %v509, %v508
    %v514 = vunpack.c.l.b16 %v512
    %v515 = vunpack.c.h.b16 %v512
    %v516 = vpack.c.b16 %v514, %v514
    %v517 = vpack.c.b16 %v515, %v515
    %s520 = scalar_lea.vmem [#allocation12], 8
    %521 = vst [vmem:[%s520] sm:$0xf] %v516
    %522 = vst [vmem:[%s520 + $0x4] sm:$0xf] %v517
    %v523 = vld [vmem:[#allocation2] sm:$0xff]
    %v524 = vld [vmem:[#allocation2 + $0x8] sm:$0xff]
    %s525 = scalar_lea.vmem [#allocation3], 32
    %v526 = vld [vmem:[%s525] sm:$0xff]
    %v527 = vld [vmem:[%s525 + $0x8] sm:$0xff]
    %v528 = vpack.c.bf16 %v524, %v523
    %529 = vmatprep.subr.bf16.mxu0 0
    %530 = vmatpush1.bf16.msra.mxu0 %v393
    %531 = vmatprep.subr.bf16.mxu0 0
    %532 = vmatpush1.bf16.msra.mxu0 %v392
    %533 = vmatprep.subr.bf16.mxu0 0
    %534 = vmatpush1.bf16.msra.mxu0 %v391
    %535 = vmatprep.subr.bf16.mxu0 0
    %536 = vmatpush1.bf16.msra.mxu0 %v390
    %537 = vmatprep.subr.bf16.mxu0 0
    %538 = vmatpush1.bf16.msra.mxu0 %v389
    %539 = vmatprep.subr.bf16.mxu0 0
    %540 = vmatpush1.bf16.msra.mxu0 %v388
    %541 = vmatprep.subr.bf16.mxu0 0
    %542 = vmatpush1.bf16.msra.mxu0 %v387
    %543 = vmatprep.subr.bf16.mxu0 0
    %544 = vmatpush1.bf16.msra.mxu0 %v386
    %545 = vmatprep.subr.bf16.mxu0 0
    %546 = vmatpush2.bf16.msra.mxu0 0
    %547 = vmatprep.subr.bf16.mxu0 0
    %548 = vmatpush2.bf16.msra.mxu0 0
    %549 = vmatprep.subr.bf16.mxu0 0
    %550 = vmatpush2.bf16.msra.mxu0 0
    %551 = vmatprep.subr.bf16.mxu0 0
    %552 = vmatpush2.bf16.msra.mxu0 0
    %553 = vmatprep.subr.bf16.mxu0 0
    %554 = vmatpush2.bf16.msra.mxu0 0
    %555 = vmatprep.subr.bf16.mxu0 0
    %556 = vmatpush2.bf16.msra.mxu0 0
    %557 = vmatprep.subr.bf16.mxu0 0
    %558 = vmatpush2.bf16.msra.mxu0 0
    %559 = vmatprep.subr.bf16.mxu0 0
    %560 = vmatpush2.bf16.msra.mxu0 0
    %561 = vmatprep.mubr.bf16.mxu0 0
    %562 = vmatmul.mubr.bf16.gmra.mxu0 %v528
    %v563 = vpop.f32.mrf.mxu0
    %v564 = vadd.f32 0.0, %v563
    %v565 = vpop.f32.mrf.mxu0
    %v566 = vpop.f32.mrf.mxu0
    %v567 = vadd.f32 0.0, %v566
    %v568 = vpop.f32.mrf.mxu0
    %569 = vdwg.mxu0
    %v570 = vadd.f32 %v526, %v564
    %v571 = vadd.f32 %v527, %v567
    %v572 = vtanh.pop %v570
    %v573 = vtanh.pop %v571
    %574 = vst [vmem:[#allocation2] sm:$0xff] %v572
    %575 = vst [vmem:[#allocation2 + $0x8] sm:$0xff] %v573
    %v576 = vpack.c.bf16 %v573, %v572
    %v578 = vunpack.c.l.b16 %v576
    %v579 = vunpack.c.h.b16 %v576
    %v580 = vpack.c.b16 %v578, %v578
    %v581 = vpack.c.b16 %v579, %v579
    %s584 = scalar_lea.vmem [#allocation12], 16
    %585 = vst [vmem:[%s584] sm:$0xf] %v580
    %586 = vst [vmem:[%s584 + $0x4] sm:$0xf] %v581
    %v587 = vld [vmem:[#allocation2] sm:$0xff]
    %v588 = vld [vmem:[#allocation2 + $0x8] sm:$0xff]
    %s589 = scalar_lea.vmem [#allocation3], 48
    %v590 = vld [vmem:[%s589] sm:$0xff]
    %v591 = vld [vmem:[%s589 + $0x8] sm:$0xff]
    %v592 = vpack.c.bf16 %v588, %v587
    %593 = vmatprep.subr.bf16.mxu0 0
    %594 = vmatpush1.bf16.msra.mxu0 %v393
    %595 = vmatprep.subr.bf16.mxu0 0
    %596 = vmatpush1.bf16.msra.mxu0 %v392
    %597 = vmatprep.subr.bf16.mxu0 0
    %598 = vmatpush1.bf16.msra.mxu0 %v391
    %599 = vmatprep.subr.bf16.mxu0 0
    %600 = vmatpush1.bf16.msra.mxu0 %v390
    %601 = vmatprep.subr.bf16.mxu0 0
    %602 = vmatpush1.bf16.msra.mxu0 %v389
    %603 = vmatprep.subr.bf16.mxu0 0
    %604 = vmatpush1.bf16.msra.mxu0 %v388
    %605 = vmatprep.subr.bf16.mxu0 0
    %606 = vmatpush1.bf16.msra.mxu0 %v387
    %607 = vmatprep.subr.bf16.mxu0 0
    %608 = vmatpush1.bf16.msra.mxu0 %v386
    %609 = vmatprep.subr.bf16.mxu0 0
    %610 = vmatpush2.bf16.msra.mxu0 0
    %611 = vmatprep.subr.bf16.mxu0 0
    %612 = vmatpush2.bf16.msra.mxu0 0
    %613 = vmatprep.subr.bf16.mxu0 0
    %614 = vmatpush2.bf16.msra.mxu0 0
    %615 = vmatprep.subr.bf16.mxu0 0
    %616 = vmatpush2.bf16.msra.mxu0 0
    %617 = vmatprep.subr.bf16.mxu0 0
    %618 = vmatpush2.bf16.msra.mxu0 0
    %619 = vmatprep.subr.bf16.mxu0 0
    %620 = vmatpush2.bf16.msra.mxu0 0
    %621 = vmatprep.subr.bf16.mxu0 0
    %622 = vmatpush2.bf16.msra.mxu0 0
    %623 = vmatprep.subr.bf16.mxu0 0
    %624 = vmatpush2.bf16.msra.mxu0 0
    %625 = vmatprep.mubr.bf16.mxu0 0
    %626 = vmatmul.mubr.bf16.gmra.mxu0 %v592
    %v627 = vpop.f32.mrf.mxu0
    %v628 = vadd.f32 0.0, %v627
    %v629 = vpop.f32.mrf.mxu0
    %v630 = vpop.f32.mrf.mxu0
    %v631 = vadd.f32 0.0, %v630
    %v632 = vpop.f32.mrf.mxu0
    %633 = vdwg.mxu0
    %v634 = vadd.f32 %v590, %v628
    %v635 = vadd.f32 %v591, %v631
    %v636 = vtanh.pop %v634
    %v637 = vtanh.pop %v635
    %638 = vst [vmem:[#allocation2] sm:$0xff] %v636
    %639 = vst [vmem:[#allocation2 + $0x8] sm:$0xff] %v637
    %v640 = vpack.c.bf16 %v637, %v636
    %v642 = vunpack.c.l.b16 %v640
    %v643 = vunpack.c.h.b16 %v640
    %v644 = vpack.c.b16 %v642, %v642
    %v645 = vpack.c.b16 %v643, %v643
    %s648 = scalar_lea.vmem [#allocation12], 24
    %649 = vst [vmem:[%s648] sm:$0xf] %v644
    %650 = vst [vmem:[%s648 + $0x4] sm:$0xf] %v645
    %v651 = vld [vmem:[#allocation2] sm:$0xff]
    %v652 = vld [vmem:[#allocation2 + $0x8] sm:$0xff]
    %s653 = scalar_lea.vmem [#allocation3], 64
    %v654 = vld [vmem:[%s653] sm:$0xff]
    %v655 = vld [vmem:[%s653 + $0x8] sm:$0xff]
    %v656 = vpack.c.bf16 %v652, %v651
    %657 = vmatprep.subr.bf16.mxu0 0
    %658 = vmatpush1.bf16.msra.mxu0 %v393
    %659 = vmatprep.subr.bf16.mxu0 0
    %660 = vmatpush1.bf16.msra.mxu0 %v392
    %661 = vmatprep.subr.bf16.mxu0 0
    %662 = vmatpush1.bf16.msra.mxu0 %v391
    %663 = vmatprep.subr.bf16.mxu0 0
    %664 = vmatpush1.bf16.msra.mxu0 %v390
    %665 = vmatprep.subr.bf16.mxu0 0
    %666 = vmatpush1.bf16.msra.mxu0 %v389
    %667 = vmatprep.subr.bf16.mxu0 0
    %668 = vmatpush1.bf16.msra.mxu0 %v388
    %669 = vmatprep.subr.bf16.mxu0 0
    %670 = vmatpush1.bf16.msra.mxu0 %v387
    %671 = vmatprep.subr.bf16.mxu0 0
    %672 = vmatpush1.bf16.msra.mxu0 %v386
    %673 = vmatprep.subr.bf16.mxu0 0
    %674 = vmatpush2.bf16.msra.mxu0 0
    %675 = vmatprep.subr.bf16.mxu0 0
    %676 = vmatpush2.bf16.msra.mxu0 0
    %677 = vmatprep.subr.bf16.mxu0 0
    %678 = vmatpush2.bf16.msra.mxu0 0
    %679 = vmatprep.subr.bf16.mxu0 0
    %680 = vmatpush2.bf16.msra.mxu0 0
    %681 = vmatprep.subr.bf16.mxu0 0
    %682 = vmatpush2.bf16.msra.mxu0 0
    %683 = vmatprep.subr.bf16.mxu0 0
    %684 = vmatpush2.bf16.msra.mxu0 0
    %685 = vmatprep.subr.bf16.mxu0 0
    %686 = vmatpush2.bf16.msra.mxu0 0
    %687 = vmatprep.subr.bf16.mxu0 0
    %688 = vmatpush2.bf16.msra.mxu0 0
    %689 = vmatprep.mubr.bf16.mxu0 0
    %690 = vmatmul.mubr.bf16.gmra.mxu0 %v656
    %v691 = vpop.f32.mrf.mxu0
    %v692 = vadd.f32 0.0, %v691
    %v693 = vpop.f32.mrf.mxu0
    %v694 = vpop.f32.mrf.mxu0
    %v695 = vadd.f32 0.0, %v694
    %v696 = vpop.f32.mrf.mxu0
    %697 = vdwg.mxu0
    %v698 = vadd.f32 %v654, %v692
    %v699 = vadd.f32 %v655, %v695
    %v700 = vtanh.pop %v698
    %v701 = vtanh.pop %v699
    %702 = vst [vmem:[#allocation2] sm:$0xff] %v700
    %703 = vst [vmem:[#allocation2 + $0x8] sm:$0xff] %v701
    %v704 = vpack.c.bf16 %v701, %v700
    %v706 = vunpack.c.l.b16 %v704
    %v707 = vunpack.c.h.b16 %v704
    %v708 = vpack.c.b16 %v706, %v706
    %v709 = vpack.c.b16 %v707, %v707
    %s712 = scalar_lea.vmem [#allocation12], 32
    %713 = vst [vmem:[%s712] sm:$0xf] %v708
    %714 = vst [vmem:[%s712 + $0x4] sm:$0xf] %v709
    %v715 = vld [vmem:[#allocation2] sm:$0xff]
    %v716 = vld [vmem:[#allocation2 + $0x8] sm:$0xff]
    %s717 = scalar_lea.vmem [#allocation3], 80
    %v718 = vld [vmem:[%s717] sm:$0xff]
    %v719 = vld [vmem:[%s717 + $0x8] sm:$0xff]
    %v720 = vpack.c.bf16 %v716, %v715
    %721 = vmatprep.subr.bf16.mxu0 0
    %722 = vmatpush1.bf16.msra.mxu0 %v393
    %723 = vmatprep.subr.bf16.mxu0 0
    %724 = vmatpush1.bf16.msra.mxu0 %v392
    %725 = vmatprep.subr.bf16.mxu0 0
    %726 = vmatpush1.bf16.msra.mxu0 %v391
    %727 = vmatprep.subr.bf16.mxu0 0
    %728 = vmatpush1.bf16.msra.mxu0 %v390
    %729 = vmatprep.subr.bf16.mxu0 0
    %730 = vmatpush1.bf16.msra.mxu0 %v389
    %731 = vmatprep.subr.bf16.mxu0 0
    %732 = vmatpush1.bf16.msra.mxu0 %v388
    %733 = vmatprep.subr.bf16.mxu0 0
    %734 = vmatpush1.bf16.msra.mxu0 %v387
    %735 = vmatprep.subr.bf16.mxu0 0
    %736 = vmatpush1.bf16.msra.mxu0 %v386
    %737 = vmatprep.subr.bf16.mxu0 0
    %738 = vmatpush2.bf16.msra.mxu0 0
    %739 = vmatprep.subr.bf16.mxu0 0
    %740 = vmatpush2.bf16.msra.mxu0 0
    %741 = vmatprep.subr.bf16.mxu0 0
    %742 = vmatpush2.bf16.msra.mxu0 0
    %743 = vmatprep.subr.bf16.mxu0 0
    %744 = vmatpush2.bf16.msra.mxu0 0
    %745 = vmatprep.subr.bf16.mxu0 0
    %746 = vmatpush2.bf16.msra.mxu0 0
    %747 = vmatprep.subr.bf16.mxu0 0
    %748 = vmatpush2.bf16.msra.mxu0 0
    %749 = vmatprep.subr.bf16.mxu0 0
    %750 = vmatpush2.bf16.msra.mxu0 0
    %751 = vmatprep.subr.bf16.mxu0 0
    %752 = vmatpush2.bf16.msra.mxu0 0
    %753 = vmatprep.mubr.bf16.mxu0 0
    %754 = vmatmul.mubr.bf16.gmra.mxu0 %v720
    %v755 = vpop.f32.mrf.mxu0
    %v756 = vadd.f32 0.0, %v755
    %v757 = vpop.f32.mrf.mxu0
    %v758 = vpop.f32.mrf.mxu0
    %v759 = vadd.f32 0.0, %v758
    %v760 = vpop.f32.mrf.mxu0
    %761 = vdwg.mxu0
    %v762 = vadd.f32 %v718, %v756
    %v763 = vadd.f32 %v719, %v759
    %v764 = vtanh.pop %v762
    %v765 = vtanh.pop %v763
    %766 = vst [vmem:[#allocation2] sm:$0xff] %v764
    %767 = vst [vmem:[#allocation2 + $0x8] sm:$0xff] %v765
    %v768 = vpack.c.bf16 %v765, %v764
    %v770 = vunpack.c.l.b16 %v768
    %v771 = vunpack.c.h.b16 %v768
    %v772 = vpack.c.b16 %v770, %v770
    %v773 = vpack.c.b16 %v771, %v771
    %s776 = scalar_lea.vmem [#allocation12], 40
    %777 = vst [vmem:[%s776] sm:$0xf] %v772
    %778 = vst [vmem:[%s776 + $0x4] sm:$0xf] %v773
    %v779 = vld [vmem:[#allocation2] sm:$0xff]
    %v780 = vld [vmem:[#allocation2 + $0x8] sm:$0xff]
    %s781 = scalar_lea.vmem [#allocation3], 96
    %v782 = vld [vmem:[%s781] sm:$0xff]
    %v783 = vld [vmem:[%s781 + $0x8] sm:$0xff]
    %v784 = vpack.c.bf16 %v780, %v779
    %785 = vmatprep.subr.bf16.mxu0 0
    %786 = vmatpush1.bf16.msra.mxu0 %v393
    %787 = vmatprep.subr.bf16.mxu0 0
    %788 = vmatpush1.bf16.msra.mxu0 %v392
    %789 = vmatprep.subr.bf16.mxu0 0
    %790 = vmatpush1.bf16.msra.mxu0 %v391
    %791 = vmatprep.subr.bf16.mxu0 0
    %792 = vmatpush1.bf16.msra.mxu0 %v390
    %793 = vmatprep.subr.bf16.mxu0 0
    %794 = vmatpush1.bf16.msra.mxu0 %v389
    %795 = vmatprep.subr.bf16.mxu0 0
    %796 = vmatpush1.bf16.msra.mxu0 %v388
    %797 = vmatprep.subr.bf16.mxu0 0
    %798 = vmatpush1.bf16.msra.mxu0 %v387
    %799 = vmatprep.subr.bf16.mxu0 0
    %800 = vmatpush1.bf16.msra.mxu0 %v386
    %801 = vmatprep.subr.bf16.mxu0 0
    %802 = vmatpush2.bf16.msra.mxu0 0
    %803 = vmatprep.subr.bf16.mxu0 0
    %804 = vmatpush2.bf16.msra.mxu0 0
    %805 = vmatprep.subr.bf16.mxu0 0
    %806 = vmatpush2.bf16.msra.mxu0 0
    %807 = vmatprep.subr.bf16.mxu0 0
    %808 = vmatpush2.bf16.msra.mxu0 0
    %809 = vmatprep.subr.bf16.mxu0 0
    %810 = vmatpush2.bf16.msra.mxu0 0
    %811 = vmatprep.subr.bf16.mxu0 0
    %812 = vmatpush2.bf16.msra.mxu0 0
    %813 = vmatprep.subr.bf16.mxu0 0
    %814 = vmatpush2.bf16.msra.mxu0 0
    %815 = vmatprep.subr.bf16.mxu0 0
    %816 = vmatpush2.bf16.msra.mxu0 0
    %817 = vmatprep.mubr.bf16.mxu0 0
    %818 = vmatmul.mubr.bf16.gmra.mxu0 %v784
    %v819 = vpop.f32.mrf.mxu0
    %v820 = vadd.f32 0.0, %v819
    %v821 = vpop.f32.mrf.mxu0
    %v822 = vpop.f32.mrf.mxu0
    %v823 = vadd.f32 0.0, %v822
    %v824 = vpop.f32.mrf.mxu0
    %825 = vdwg.mxu0
    %v826 = vadd.f32 %v782, %v820
    %v827 = vadd.f32 %v783, %v823
    %v828 = vtanh.pop %v826
    %v829 = vtanh.pop %v827
    %830 = vst [vmem:[#allocation2] sm:$0xff] %v828
    %831 = vst [vmem:[#allocation2 + $0x8] sm:$0xff] %v829
    %v832 = vpack.c.bf16 %v829, %v828
    %v834 = vunpack.c.l.b16 %v832
    %v835 = vunpack.c.h.b16 %v832
    %v836 = vpack.c.b16 %v834, %v834
    %v837 = vpack.c.b16 %v835, %v835
    %s840 = scalar_lea.vmem [#allocation12], 48
    %841 = vst [vmem:[%s840] sm:$0xf] %v836
    %842 = vst [vmem:[%s840 + $0x4] sm:$0xf] %v837
    %v843 = vld [vmem:[#allocation2] sm:$0xff]
    %v844 = vld [vmem:[#allocation2 + $0x8] sm:$0xff]
    %s845 = scalar_lea.vmem [#allocation3], 112
    %v846 = vld [vmem:[%s845] sm:$0xff]
    %v847 = vld [vmem:[%s845 + $0x8] sm:$0xff]
    %v848 = vpack.c.bf16 %v844, %v843
    %849 = vmatprep.subr.bf16.mxu0 0
    %850 = vmatpush1.bf16.msra.mxu0 %v393
    %851 = vmatprep.subr.bf16.mxu0 0
    %852 = vmatpush1.bf16.msra.mxu0 %v392
    %853 = vmatprep.subr.bf16.mxu0 0
    %854 = vmatpush1.bf16.msra.mxu0 %v391
    %855 = vmatprep.subr.bf16.mxu0 0
    %856 = vmatpush1.bf16.msra.mxu0 %v390
    %857 = vmatprep.subr.bf16.mxu0 0
    %858 = vmatpush1.bf16.msra.mxu0 %v389
    %859 = vmatprep.subr.bf16.mxu0 0
    %860 = vmatpush1.bf16.msra.mxu0 %v388
    %861 = vmatprep.subr.bf16.mxu0 0
    %862 = vmatpush1.bf16.msra.mxu0 %v387
    %863 = vmatprep.subr.bf16.mxu0 0
    %864 = vmatpush1.bf16.msra.mxu0 %v386
    %865 = vmatprep.subr.bf16.mxu0 0
    %866 = vmatpush2.bf16.msra.mxu0 0
    %867 = vmatprep.subr.bf16.mxu0 0
    %868 = vmatpush2.bf16.msra.mxu0 0
    %869 = vmatprep.subr.bf16.mxu0 0
    %870 = vmatpush2.bf16.msra.mxu0 0
    %871 = vmatprep.subr.bf16.mxu0 0
    %872 = vmatpush2.bf16.msra.mxu0 0
    %873 = vmatprep.subr.bf16.mxu0 0
    %874 = vmatpush2.bf16.msra.mxu0 0
    %875 = vmatprep.subr.bf16.mxu0 0
    %876 = vmatpush2.bf16.msra.mxu0 0
    %877 = vmatprep.subr.bf16.mxu0 0
    %878 = vmatpush2.bf16.msra.mxu0 0
    %879 = vmatprep.subr.bf16.mxu0 0
    %880 = vmatpush2.bf16.msra.mxu0 0
    %881 = vmatprep.mubr.bf16.mxu0 0
    %882 = vmatmul.mubr.bf16.gmra.mxu0 %v848
    %v883 = vpop.f32.mrf.mxu0
    %v884 = vadd.f32 0.0, %v883
    %v885 = vpop.f32.mrf.mxu0
    %v886 = vpop.f32.mrf.mxu0
    %v887 = vadd.f32 0.0, %v886
    %v888 = vpop.f32.mrf.mxu0
    %889 = vdwg.mxu0
    %v890 = vadd.f32 %v846, %v884
    %v891 = vadd.f32 %v847, %v887
    %v892 = vtanh.pop %v890
    %v893 = vtanh.pop %v891
    %894 = vst [vmem:[#allocation2] sm:$0xff] %v892
    %895 = vst [vmem:[#allocation2 + $0x8] sm:$0xff] %v893
    %v896 = vpack.c.bf16 %v893, %v892
    %v898 = vunpack.c.l.b16 %v896
    %v899 = vunpack.c.h.b16 %v896
    %v900 = vpack.c.b16 %v898, %v898
    %v901 = vpack.c.b16 %v899, %v899
    %s904 = scalar_lea.vmem [#allocation12], 56
    %905 = vst [vmem:[%s904] sm:$0xf] %v900
    %906 = vst [vmem:[%s904 + $0x4] sm:$0xf] %v901
    // Predicated region
    $region42: #{tpu_custom_call.1} parent=1 // pred_check
      _
    $region43: #{tpu_custom_call.1} parent=1 // pred_check_branch
      %908 = sbr.rel (0) target = $region45
    $region44: #{tpu_custom_call.1} parent=1 // pred_region
      %s910 = ssub.s32 1024, 1024
      %911 = vsyncadd [#allocation6], %s910
      %s912 = sshll.u32 [#allocation12], 4
      %s913 = int_to_ptr.vmem [resolvable:$true] %s912
      %918 = dma.vmem_to_hbm [thread:$0]  %s913, 1024, %s5, [#allocation6], 64, 64, 4
    $region45: #{tpu_custom_call.1} parent=1 // pred_fallthru
      _
    // Predicated region
    $region46: #{tpu_custom_call.1} parent=1 // pred_check
      _
    $region47: #{tpu_custom_call.1} parent=1 // pred_check_branch
      %920 = sbr.rel (0) target = $region49
    $region48: #{tpu_custom_call.1} parent=1 // pred_region
      %921 = dma.done [#allocation6], 1024
    $region49: #{tpu_custom_call.1} parent=1 // pred_fallthru
      _
    %922 = vsyncpa [#allocation5], 1
    %923 = vsyncpa [#allocation8], 1
    %924 = vsyncpa [#allocation11], 1
    %925 = vsyncpa [#allocation6], 1

</llo_original>
